<compile_context>
chip_gen: v6e
topology: v6e:2x2x1
jax: 0.10.0
libtpu: 0.0.40
codegen_flags: <defaults>
</compile_context>

<pallas_src>
import jax
import jax.numpy as jnp
from jax.experimental import pallas as pl
from jax.experimental.pallas import tpu as pltpu


# ----------------------------------------------------------------------------
# Fused kernel (whole forward pass, unrolled at trace time)
# ----------------------------------------------------------------------------
def _make_fused_kernel(num_layers):
    """Builds a kernel taking:
         inputs : x (B,Din) f32,
                  w0 (Din,H) bf16,
                  [w_rest (L-1,H,H) bf16]          (only if L > 1)
                  bgb (3L,H) f32  rows [b0,g0,be0, b1,g1,be1, ...],
                  w_out (H,Din) bf16,
                  b_out (1,Din) f32
         outputs: y (B,Din) f32, metrics_row (1,128) f32
       metrics_row layout: [0]=entropy [1]=coherence [2]=integrity
                           [3]=quantum_resistance
    """
    L = num_layers
    has_rest = L > 1

    def kernel(*refs):
        idx = 0
        x_ref = refs[idx]; idx += 1
        w0_ref = refs[idx]; idx += 1
        w_rest_ref = None
        if has_rest:
            w_rest_ref = refs[idx]; idx += 1
        bgb_ref = refs[idx]; idx += 1
        w_out_ref = refs[idx]; idx += 1
        b_out_ref = refs[idx]; idx += 1
        y_ref = refs[idx]; idx += 1
        m_ref = refs[idx]; idx += 1

        x0 = x_ref[...]                                   # (B, Din) f32
        B = x0.shape[0]
        h_bf = x0.astype(jnp.bfloat16)                    # MXU operand in bf16

        coh_acc = None                                    # (B, 1)  sum |qs| rows
        pur_acc = None                                    # (B, H)  sum of LN outputs
        H = None

        # ---- quantum security layers (unrolled at trace time) ----
        for l in range(L):
            w = w0_ref[...] if l == 0 else w_rest_ref[l - 1]   # static views
            b = bgb_ref[3 * l:3 * l + 1, :]                    # (1, H) f32
            g = bgb_ref[3 * l + 1:3 * l + 2, :]
            be = bgb_ref[3 * l + 2:3 * l + 3, :]

            qs = jnp.dot(h_bf, w, preferred_element_type=jnp.float32) + b
            a = jnp.abs(qs)                               # == |qs * exp(i*phase)|
            H = a.shape[-1]
            inv_h = 1.0 / H

            # Independent row reductions (can issue to both XLUs); one-pass var.
            s1 = jnp.sum(a, axis=-1, keepdims=True)       # (B, 1)
            s2 = jnp.sum(a * a, axis=-1, keepdims=True)   # (B, 1)
            mean = s1 * inv_h
            var = s2 * inv_h - mean * mean                # E[a^2] - mean^2
            normed = (a - mean) * jax.lax.rsqrt(var + 1e-5)
            y = normed * g + be                           # LayerNorm affine

            # Metric accumulation: cheap VPU adds, reductions deferred to epilogue.
            coh_acc = s1 if coh_acc is None else coh_acc + s1
            pur_acc = y if pur_acc is None else pur_acc + y

            h_bf = y.astype(jnp.bfloat16)                 # dropout = identity (eval)

        # ---- output linear ----
        out = jnp.dot(h_bf, w_out_ref[...],
                      preferred_element_type=jnp.float32) + b_out_ref[...]
        y_ref[...] = out

        # ---- system-level metrics (epilogue, off the per-layer critical path) ----
        denom = 1.0 / (L * B * H)
        coherence = jnp.sum(coh_acc) * denom              # mean_l mean|qs_l|
        resistance = jnp.sum(pur_acc) * denom             # mean_l mean(LN out_l)

        a_out = jnp.abs(out)
        entropy = -jnp.sum(a_out * jnp.log(a_out + 1e-10))

        dot = jnp.sum(x0 * out, axis=-1, keepdims=True)   # (B, 1)
        nx = jnp.sqrt(jnp.sum(x0 * x0, axis=-1, keepdims=True))
        no = jnp.sqrt(jnp.sum(out * out, axis=-1, keepdims=True))
        cos = dot / jnp.maximum(nx * no, 1e-8)            # torch eps on product
        integrity = jnp.sum(cos) * (1.0 / B)

        # ---- pack scalars into one lane-dense (1,128) row (independent selects) ----
        lane = jax.lax.broadcasted_iota(jnp.int32, (1, 128), 1)
        row = (jnp.where(lane == 0, entropy, 0.0)
               + jnp.where(lane == 1, coherence, 0.0)
               + jnp.where(lane == 2, integrity, 0.0)
               + jnp.where(lane == 3, resistance, 0.0))
        m_ref[...] = row

    return kernel


# ----------------------------------------------------------------------------
# Wrapper
# ----------------------------------------------------------------------------
_VMEM_SPEC = pl.BlockSpec(memory_space=pltpu.MemorySpace.VMEM)


@jax.jit
def quantum_security_forward(params, x):
    """Returns (output, metrics_dict) mirroring QuantumSecuritySystem.forward."""
    B, Din = x.shape
    bgb = params["bgb"]
    L = bgb.shape[0] // 3

    inputs = [x, params["w0"]]
    if params["w_rest"] is not None:
        inputs.append(params["w_rest"])
    inputs += [bgb, params["w_out"], params["b_out"]]

    out, metrics_row = pl.pallas_call(
        _make_fused_kernel(L),
        out_shape=(jax.ShapeDtypeStruct((B, Din), jnp.float32),
                   jax.ShapeDtypeStruct((1, 128), jnp.float32)),
        in_specs=[_VMEM_SPEC] * len(inputs),
        out_specs=(_VMEM_SPEC, _VMEM_SPEC),
    )(*inputs)

    metrics = {
        "entropy": metrics_row[0, 0],
        "coherence": metrics_row[0, 1],
        "integrity": metrics_row[0, 2],
        "quantum_resistance": metrics_row[0, 3],
    }
    return out, metrics


# ----------------------------------------------------------------------------
# Parameter construction (pre-packed / pre-transposed / bf16 weights)
# ----------------------------------------------------------------------------
def init_params(key, input_dim, hidden_dim, num_layers):
    w0 = None
    w_rest_list = []
    bgb_rows = []
    for i in range(num_layers):
        din = input_dim if i == 0 else hidden_dim
        key, k_w, k_b = jax.random.split(key, 3)
        bound = float(din) ** -0.5
        # stored pre-transposed: (din, hidden) so the kernel does x @ W_t + b
        w = jax.random.uniform(k_w, (din, hidden_dim), jnp.float32, -bound, bound)
        b = jax.random.uniform(k_b, (hidden_dim,), jnp.float32, -bound, bound)
        gamma = jnp.ones((hidden_dim,), jnp.float32)
        beta = jnp.zeros((hidden_dim,), jnp.float32)
        if i == 0:
            w0 = w.astype(jnp.bfloat16)
        else:
            w_rest_list.append(w.astype(jnp.bfloat16))
        bgb_rows += [b, gamma, beta]

    w_rest = jnp.stack(w_rest_list) if w_rest_list else None   # (L-1, H, H) bf16
    bgb = jnp.stack(bgb_rows)                                  # (3L, H) f32

    key, k_w, k_b = jax.random.split(key, 3)
    bound = float(hidden_dim) ** -0.5
    w_out = jax.random.uniform(k_w, (hidden_dim, input_dim), jnp.float32,
                               -bound, bound).astype(jnp.bfloat16)
    b_out = jax.random.uniform(k_b, (1, input_dim), jnp.float32, -bound, bound)

    return {"w0": w0, "w_rest": w_rest, "bgb": bgb,
            "w_out": w_out, "b_out": b_out}


# ----------------------------------------------------------------------------
# Main
# ----------------------------------------------------------------------------
if __name__ == "__main__":
    # Small but lane-dense config (last dims multiples of 128 so all stores are
    # unmasked full-lane vst); consistent with SecurityConfig structure.
    # NOTE: at B=8 the MXU is latency- not throughput-bound; scale B (and add a
    # parallel batch grid axis for v7x megacore) for real matmul utilization.
    INPUT_DIM = 128
    HIDDEN_DIM = 128
    NUM_LAYERS = 4
    BATCH = 8

    key = jax.random.PRNGKey(0)
    k_param, k_x = jax.random.split(key)
    params = init_params(k_param, INPUT_DIM, HIDDEN_DIM, NUM_LAYERS)
    x = jax.random.normal(k_x, (BATCH, INPUT_DIM), jnp.float32)

    out, metrics = quantum_security_forward(params, x)
    jax.block_until_ready(out)
    jax.block_until_ready(metrics)

    assert out.shape == (BATCH, INPUT_DIM)
    assert all(bool(jnp.isfinite(v)) for v in metrics.values())
    print("KERNEL_OK")
</pallas_src>

<mosaic_0001>
module attributes {stable_mosaic.version = 11 : i64} {
  func.func @kernel(%arg0: memref<8x128xf32, #tpu.memory_space<vmem>>, %arg1: memref<128x128xbf16, #tpu.memory_space<vmem>>, %arg2: memref<3x128x128xbf16, #tpu.memory_space<vmem>>, %arg3: memref<12x128xf32, #tpu.memory_space<vmem>>, %arg4: memref<128x128xbf16, #tpu.memory_space<vmem>>, %arg5: memref<1x128xf32, #tpu.memory_space<vmem>>, %arg6: memref<8x128xf32, #tpu.memory_space<vmem>>, %arg7: memref<1x128xf32, #tpu.memory_space<vmem>>) attributes {dimension_semantics = [], scalar_prefetch = 0 : i64, scratch_operands = 0 : i64, tpu.core_type = #tpu.core_type<tc>} {
    %c0 = arith.constant 0 : index
    %c0_0 = arith.constant 0 : index
    %0 = vector.load %arg0[%c0, %c0_0] : memref<8x128xf32, #tpu.memory_space<vmem>>, vector<8x128xf32>
    %1 = arith.truncf %0 : vector<8x128xf32> to vector<8x128xbf16>
    %c0_1 = arith.constant 0 : index
    %c0_2 = arith.constant 0 : index
    %2 = vector.load %arg1[%c0_1, %c0_2] : memref<128x128xbf16, #tpu.memory_space<vmem>>, vector<128x128xbf16>
    %c0_3 = arith.constant 0 : index
    %c0_4 = arith.constant 0 : index
    %3 = vector.load %arg3[%c0_3, %c0_4] : memref<12x128xf32, #tpu.memory_space<vmem>>, vector<1x128xf32>
    %c1 = arith.constant 1 : index
    %c0_5 = arith.constant 0 : index
    %4 = vector.load %arg3[%c1, %c0_5] : memref<12x128xf32, #tpu.memory_space<vmem>>, vector<1x128xf32>
    %c2 = arith.constant 2 : index
    %c0_6 = arith.constant 0 : index
    %5 = vector.load %arg3[%c2, %c0_6] : memref<12x128xf32, #tpu.memory_space<vmem>>, vector<1x128xf32>
    %cst = arith.constant dense<0.000000e+00> : vector<8x128xf32>
    %6 = tpu.matmul %1, %2, %cst {dimension_numbers = #tpu.dot_dimension_numbers<[1], [0], [0], [1], [0, 0, 1, 1], [], []>} : vector<8x128xbf16>, vector<128x128xbf16>, vector<8x128xf32> -> vector<8x128xf32>
    %7 = vector.broadcast %3 : vector<1x128xf32> to vector<8x128xf32>
    %8 = arith.addf %6, %7 : vector<8x128xf32>
    %9 = math.absf %8 : vector<8x128xf32>
    %cst_7 = arith.constant dense<0.000000e+00> : vector<8xf32>
    %10 = vector.multi_reduction <add>, %9, %cst_7 [1] : vector<8x128xf32> to vector<8xf32>
    %11 = vector.shape_cast %10 : vector<8xf32> to vector<8x1xf32>
    %12 = arith.mulf %9, %9 : vector<8x128xf32>
    %cst_8 = arith.constant dense<0.000000e+00> : vector<8xf32>
    %13 = vector.multi_reduction <add>, %12, %cst_8 [1] : vector<8x128xf32> to vector<8xf32>
    %14 = vector.shape_cast %13 : vector<8xf32> to vector<8x1xf32>
    %cst_9 = arith.constant 7.812500e-03 : f32
    %15 = vector.broadcast %cst_9 : f32 to vector<8x1xf32>
    %16 = arith.mulf %11, %15 : vector<8x1xf32>
    %cst_10 = arith.constant 7.812500e-03 : f32
    %17 = vector.broadcast %cst_10 : f32 to vector<8x1xf32>
    %18 = arith.mulf %14, %17 : vector<8x1xf32>
    %19 = arith.mulf %16, %16 : vector<8x1xf32>
    %20 = arith.subf %18, %19 : vector<8x1xf32>
    %21 = vector.broadcast %16 : vector<8x1xf32> to vector<8x128xf32>
    %22 = arith.subf %9, %21 : vector<8x128xf32>
    %cst_11 = arith.constant 9.99999974E-6 : f32
    %23 = vector.broadcast %cst_11 : f32 to vector<8x1xf32>
    %24 = arith.addf %20, %23 : vector<8x1xf32>
    %25 = math.rsqrt %24 : vector<8x1xf32>
    %26 = vector.broadcast %25 : vector<8x1xf32> to vector<8x128xf32>
    %27 = arith.mulf %22, %26 : vector<8x128xf32>
    %28 = vector.broadcast %4 : vector<1x128xf32> to vector<8x128xf32>
    %29 = arith.mulf %27, %28 : vector<8x128xf32>
    %30 = vector.broadcast %5 : vector<1x128xf32> to vector<8x128xf32>
    %31 = arith.addf %29, %30 : vector<8x128xf32>
    %32 = arith.truncf %31 : vector<8x128xf32> to vector<8x128xbf16>
    %c0_12 = arith.constant 0 : index
    %c0_13 = arith.constant 0 : index
    %c0_14 = arith.constant 0 : index
    %33 = vector.load %arg2[%c0_12, %c0_13, %c0_14] : memref<3x128x128xbf16, #tpu.memory_space<vmem>>, vector<1x128x128xbf16>
    %34 = vector.shape_cast %33 : vector<1x128x128xbf16> to vector<128x128xbf16>
    %c3 = arith.constant 3 : index
    %c0_15 = arith.constant 0 : index
    %35 = vector.load %arg3[%c3, %c0_15] : memref<12x128xf32, #tpu.memory_space<vmem>>, vector<1x128xf32>
    %c4 = arith.constant 4 : index
    %c0_16 = arith.constant 0 : index
    %36 = vector.load %arg3[%c4, %c0_16] : memref<12x128xf32, #tpu.memory_space<vmem>>, vector<1x128xf32>
    %c5 = arith.constant 5 : index
    %c0_17 = arith.constant 0 : index
    %37 = vector.load %arg3[%c5, %c0_17] : memref<12x128xf32, #tpu.memory_space<vmem>>, vector<1x128xf32>
    %cst_18 = arith.constant dense<0.000000e+00> : vector<8x128xf32>
    %38 = tpu.matmul %32, %34, %cst_18 {dimension_numbers = #tpu.dot_dimension_numbers<[1], [0], [0], [1], [0, 0, 1, 1], [], []>} : vector<8x128xbf16>, vector<128x128xbf16>, vector<8x128xf32> -> vector<8x128xf32>
    %39 = vector.broadcast %35 : vector<1x128xf32> to vector<8x128xf32>
    %40 = arith.addf %38, %39 : vector<8x128xf32>
    %41 = math.absf %40 : vector<8x128xf32>
    %cst_19 = arith.constant dense<0.000000e+00> : vector<8xf32>
    %42 = vector.multi_reduction <add>, %41, %cst_19 [1] : vector<8x128xf32> to vector<8xf32>
    %43 = vector.shape_cast %42 : vector<8xf32> to vector<8x1xf32>
    %44 = arith.mulf %41, %41 : vector<8x128xf32>
    %cst_20 = arith.constant dense<0.000000e+00> : vector<8xf32>
    %45 = vector.multi_reduction <add>, %44, %cst_20 [1] : vector<8x128xf32> to vector<8xf32>
    %46 = vector.shape_cast %45 : vector<8xf32> to vector<8x1xf32>
    %cst_21 = arith.constant 7.812500e-03 : f32
    %47 = vector.broadcast %cst_21 : f32 to vector<8x1xf32>
    %48 = arith.mulf %43, %47 : vector<8x1xf32>
    %cst_22 = arith.constant 7.812500e-03 : f32
    %49 = vector.broadcast %cst_22 : f32 to vector<8x1xf32>
    %50 = arith.mulf %46, %49 : vector<8x1xf32>
    %51 = arith.mulf %48, %48 : vector<8x1xf32>
    %52 = arith.subf %50, %51 : vector<8x1xf32>
    %53 = vector.broadcast %48 : vector<8x1xf32> to vector<8x128xf32>
    %54 = arith.subf %41, %53 : vector<8x128xf32>
    %cst_23 = arith.constant 9.99999974E-6 : f32
    %55 = vector.broadcast %cst_23 : f32 to vector<8x1xf32>
    %56 = arith.addf %52, %55 : vector<8x1xf32>
    %57 = math.rsqrt %56 : vector<8x1xf32>
    %58 = vector.broadcast %57 : vector<8x1xf32> to vector<8x128xf32>
    %59 = arith.mulf %54, %58 : vector<8x128xf32>
    %60 = vector.broadcast %36 : vector<1x128xf32> to vector<8x128xf32>
    %61 = arith.mulf %59, %60 : vector<8x128xf32>
    %62 = vector.broadcast %37 : vector<1x128xf32> to vector<8x128xf32>
    %63 = arith.addf %61, %62 : vector<8x128xf32>
    %64 = arith.addf %11, %43 : vector<8x1xf32>
    %65 = arith.addf %31, %63 : vector<8x128xf32>
    %66 = arith.truncf %63 : vector<8x128xf32> to vector<8x128xbf16>
    %c1_24 = arith.constant 1 : index
    %c0_25 = arith.constant 0 : index
    %c0_26 = arith.constant 0 : index
    %67 = vector.load %arg2[%c1_24, %c0_25, %c0_26] : memref<3x128x128xbf16, #tpu.memory_space<vmem>>, vector<1x128x128xbf16>
    %68 = vector.shape_cast %67 : vector<1x128x128xbf16> to vector<128x128xbf16>
    %c6 = arith.constant 6 : index
    %c0_27 = arith.constant 0 : index
    %69 = vector.load %arg3[%c6, %c0_27] : memref<12x128xf32, #tpu.memory_space<vmem>>, vector<1x128xf32>
    %c7 = arith.constant 7 : index
    %c0_28 = arith.constant 0 : index
    %70 = vector.load %arg3[%c7, %c0_28] : memref<12x128xf32, #tpu.memory_space<vmem>>, vector<1x128xf32>
    %c8 = arith.constant 8 : index
    %c0_29 = arith.constant 0 : index
    %71 = vector.load %arg3[%c8, %c0_29] : memref<12x128xf32, #tpu.memory_space<vmem>>, vector<1x128xf32>
    %cst_30 = arith.constant dense<0.000000e+00> : vector<8x128xf32>
    %72 = tpu.matmul %66, %68, %cst_30 {dimension_numbers = #tpu.dot_dimension_numbers<[1], [0], [0], [1], [0, 0, 1, 1], [], []>} : vector<8x128xbf16>, vector<128x128xbf16>, vector<8x128xf32> -> vector<8x128xf32>
    %73 = vector.broadcast %69 : vector<1x128xf32> to vector<8x128xf32>
    %74 = arith.addf %72, %73 : vector<8x128xf32>
    %75 = math.absf %74 : vector<8x128xf32>
    %cst_31 = arith.constant dense<0.000000e+00> : vector<8xf32>
    %76 = vector.multi_reduction <add>, %75, %cst_31 [1] : vector<8x128xf32> to vector<8xf32>
    %77 = vector.shape_cast %76 : vector<8xf32> to vector<8x1xf32>
    %78 = arith.mulf %75, %75 : vector<8x128xf32>
    %cst_32 = arith.constant dense<0.000000e+00> : vector<8xf32>
    %79 = vector.multi_reduction <add>, %78, %cst_32 [1] : vector<8x128xf32> to vector<8xf32>
    %80 = vector.shape_cast %79 : vector<8xf32> to vector<8x1xf32>
    %cst_33 = arith.constant 7.812500e-03 : f32
    %81 = vector.broadcast %cst_33 : f32 to vector<8x1xf32>
    %82 = arith.mulf %77, %81 : vector<8x1xf32>
    %cst_34 = arith.constant 7.812500e-03 : f32
    %83 = vector.broadcast %cst_34 : f32 to vector<8x1xf32>
    %84 = arith.mulf %80, %83 : vector<8x1xf32>
    %85 = arith.mulf %82, %82 : vector<8x1xf32>
    %86 = arith.subf %84, %85 : vector<8x1xf32>
    %87 = vector.broadcast %82 : vector<8x1xf32> to vector<8x128xf32>
    %88 = arith.subf %75, %87 : vector<8x128xf32>
    %cst_35 = arith.constant 9.99999974E-6 : f32
    %89 = vector.broadcast %cst_35 : f32 to vector<8x1xf32>
    %90 = arith.addf %86, %89 : vector<8x1xf32>
    %91 = math.rsqrt %90 : vector<8x1xf32>
    %92 = vector.broadcast %91 : vector<8x1xf32> to vector<8x128xf32>
    %93 = arith.mulf %88, %92 : vector<8x128xf32>
    %94 = vector.broadcast %70 : vector<1x128xf32> to vector<8x128xf32>
    %95 = arith.mulf %93, %94 : vector<8x128xf32>
    %96 = vector.broadcast %71 : vector<1x128xf32> to vector<8x128xf32>
    %97 = arith.addf %95, %96 : vector<8x128xf32>
    %98 = arith.addf %64, %77 : vector<8x1xf32>
    %99 = arith.addf %65, %97 : vector<8x128xf32>
    %100 = arith.truncf %97 : vector<8x128xf32> to vector<8x128xbf16>
    %c2_36 = arith.constant 2 : index
    %c0_37 = arith.constant 0 : index
    %c0_38 = arith.constant 0 : index
    %101 = vector.load %arg2[%c2_36, %c0_37, %c0_38] : memref<3x128x128xbf16, #tpu.memory_space<vmem>>, vector<1x128x128xbf16>
    %102 = vector.shape_cast %101 : vector<1x128x128xbf16> to vector<128x128xbf16>
    %c9 = arith.constant 9 : index
    %c0_39 = arith.constant 0 : index
    %103 = vector.load %arg3[%c9, %c0_39] : memref<12x128xf32, #tpu.memory_space<vmem>>, vector<1x128xf32>
    %c10 = arith.constant 10 : index
    %c0_40 = arith.constant 0 : index
    %104 = vector.load %arg3[%c10, %c0_40] : memref<12x128xf32, #tpu.memory_space<vmem>>, vector<1x128xf32>
    %c11 = arith.constant 11 : index
    %c0_41 = arith.constant 0 : index
    %105 = vector.load %arg3[%c11, %c0_41] : memref<12x128xf32, #tpu.memory_space<vmem>>, vector<1x128xf32>
    %cst_42 = arith.constant dense<0.000000e+00> : vector<8x128xf32>
    %106 = tpu.matmul %100, %102, %cst_42 {dimension_numbers = #tpu.dot_dimension_numbers<[1], [0], [0], [1], [0, 0, 1, 1], [], []>} : vector<8x128xbf16>, vector<128x128xbf16>, vector<8x128xf32> -> vector<8x128xf32>
    %107 = vector.broadcast %103 : vector<1x128xf32> to vector<8x128xf32>
    %108 = arith.addf %106, %107 : vector<8x128xf32>
    %109 = math.absf %108 : vector<8x128xf32>
    %cst_43 = arith.constant dense<0.000000e+00> : vector<8xf32>
    %110 = vector.multi_reduction <add>, %109, %cst_43 [1] : vector<8x128xf32> to vector<8xf32>
    %111 = vector.shape_cast %110 : vector<8xf32> to vector<8x1xf32>
    %112 = arith.mulf %109, %109 : vector<8x128xf32>
    %cst_44 = arith.constant dense<0.000000e+00> : vector<8xf32>
    %113 = vector.multi_reduction <add>, %112, %cst_44 [1] : vector<8x128xf32> to vector<8xf32>
    %114 = vector.shape_cast %113 : vector<8xf32> to vector<8x1xf32>
    %cst_45 = arith.constant 7.812500e-03 : f32
    %115 = vector.broadcast %cst_45 : f32 to vector<8x1xf32>
    %116 = arith.mulf %111, %115 : vector<8x1xf32>
    %cst_46 = arith.constant 7.812500e-03 : f32
    %117 = vector.broadcast %cst_46 : f32 to vector<8x1xf32>
    %118 = arith.mulf %114, %117 : vector<8x1xf32>
    %119 = arith.mulf %116, %116 : vector<8x1xf32>
    %120 = arith.subf %118, %119 : vector<8x1xf32>
    %121 = vector.broadcast %116 : vector<8x1xf32> to vector<8x128xf32>
    %122 = arith.subf %109, %121 : vector<8x128xf32>
    %cst_47 = arith.constant 9.99999974E-6 : f32
    %123 = vector.broadcast %cst_47 : f32 to vector<8x1xf32>
    %124 = arith.addf %120, %123 : vector<8x1xf32>
    %125 = math.rsqrt %124 : vector<8x1xf32>
    %126 = vector.broadcast %125 : vector<8x1xf32> to vector<8x128xf32>
    %127 = arith.mulf %122, %126 : vector<8x128xf32>
    %128 = vector.broadcast %104 : vector<1x128xf32> to vector<8x128xf32>
    %129 = arith.mulf %127, %128 : vector<8x128xf32>
    %130 = vector.broadcast %105 : vector<1x128xf32> to vector<8x128xf32>
    %131 = arith.addf %129, %130 : vector<8x128xf32>
    %132 = arith.addf %98, %111 : vector<8x1xf32>
    %133 = arith.addf %99, %131 : vector<8x128xf32>
    %134 = arith.truncf %131 : vector<8x128xf32> to vector<8x128xbf16>
    %c0_48 = arith.constant 0 : index
    %c0_49 = arith.constant 0 : index
    %135 = vector.load %arg4[%c0_48, %c0_49] : memref<128x128xbf16, #tpu.memory_space<vmem>>, vector<128x128xbf16>
    %cst_50 = arith.constant dense<0.000000e+00> : vector<8x128xf32>
    %136 = tpu.matmul %134, %135, %cst_50 {dimension_numbers = #tpu.dot_dimension_numbers<[1], [0], [0], [1], [0, 0, 1, 1], [], []>} : vector<8x128xbf16>, vector<128x128xbf16>, vector<8x128xf32> -> vector<8x128xf32>
    %c0_51 = arith.constant 0 : index
    %c0_52 = arith.constant 0 : index
    %137 = vector.load %arg5[%c0_51, %c0_52] : memref<1x128xf32, #tpu.memory_space<vmem>>, vector<1x128xf32>
    %138 = vector.broadcast %137 : vector<1x128xf32> to vector<8x128xf32>
    %139 = arith.addf %136, %138 : vector<8x128xf32>
    %c0_53 = arith.constant 0 : index
    %c0_54 = arith.constant 0 : index
    %140 = vector.load %arg6[%c0_53, %c0_54] : memref<8x128xf32, #tpu.memory_space<vmem>>, vector<8x128xf32>
    tpu.vector_store %arg6[%c0_53, %c0_54], %139 {strides = array<i32>} : memref<8x128xf32, #tpu.memory_space<vmem>>, vector<8x128xf32>,
    %141 = vector.shape_cast %132 : vector<8x1xf32> to vector<1x8x1xf32>
    %cst_55 = arith.constant dense<0.000000e+00> : vector<1xf32>
    %142 = vector.multi_reduction <add>, %141, %cst_55 [1, 2] : vector<1x8x1xf32> to vector<1xf32>
    %143 = vector.shape_cast %142 : vector<1xf32> to vector<1x1x1xf32>
    %144 = vector.extract %143[0, 0, 0] : f32 from vector<1x1x1xf32>
    %cst_56 = arith.constant 2.44140625E-4 : f32
    %145 = arith.mulf %144, %cst_56 : f32
    %146 = vector.shape_cast %133 : vector<8x128xf32> to vector<1x8x128xf32>
    %cst_57 = arith.constant dense<0.000000e+00> : vector<1xf32>
    %147 = vector.multi_reduction <add>, %146, %cst_57 [1, 2] : vector<1x8x128xf32> to vector<1xf32>
    %148 = vector.shape_cast %147 : vector<1xf32> to vector<1x1x1xf32>
    %149 = vector.extract %148[0, 0, 0] : f32 from vector<1x1x1xf32>
    %cst_58 = arith.constant 2.44140625E-4 : f32
    %150 = arith.mulf %149, %cst_58 : f32
    %151 = math.absf %139 : vector<8x128xf32>
    %cst_59 = arith.constant 1.000000e-10 : f32
    %152 = vector.broadcast %cst_59 : f32 to vector<8x128xf32>
    %153 = arith.addf %151, %152 : vector<8x128xf32>
    %154 = math.log %153 : vector<8x128xf32>
    %155 = arith.mulf %151, %154 : vector<8x128xf32>
    %156 = vector.shape_cast %155 : vector<8x128xf32> to vector<1x8x128xf32>
    %cst_60 = arith.constant dense<0.000000e+00> : vector<1xf32>
    %157 = vector.multi_reduction <add>, %156, %cst_60 [1, 2] : vector<1x8x128xf32> to vector<1xf32>
    %158 = vector.shape_cast %157 : vector<1xf32> to vector<1x1x1xf32>
    %159 = vector.extract %158[0, 0, 0] : f32 from vector<1x1x1xf32>
    %cst_61 = arith.constant 0.000000e+00 : f32
    %160 = arith.subf %cst_61, %159 : f32
    %161 = arith.mulf %0, %139 : vector<8x128xf32>
    %cst_62 = arith.constant dense<0.000000e+00> : vector<8xf32>
    %162 = vector.multi_reduction <add>, %161, %cst_62 [1] : vector<8x128xf32> to vector<8xf32>
    %163 = vector.shape_cast %162 : vector<8xf32> to vector<8x1xf32>
    %164 = arith.mulf %0, %0 : vector<8x128xf32>
    %cst_63 = arith.constant dense<0.000000e+00> : vector<8xf32>
    %165 = vector.multi_reduction <add>, %164, %cst_63 [1] : vector<8x128xf32> to vector<8xf32>
    %166 = vector.shape_cast %165 : vector<8xf32> to vector<8x1xf32>
    %167 = math.sqrt %166 : vector<8x1xf32>
    %168 = arith.mulf %139, %139 : vector<8x128xf32>
    %cst_64 = arith.constant dense<0.000000e+00> : vector<8xf32>
    %169 = vector.multi_reduction <add>, %168, %cst_64 [1] : vector<8x128xf32> to vector<8xf32>
    %170 = vector.shape_cast %169 : vector<8xf32> to vector<8x1xf32>
    %171 = math.sqrt %170 : vector<8x1xf32>
    %172 = arith.mulf %167, %171 : vector<8x1xf32>
    %cst_65 = arith.constant 9.99999993E-9 : f32
    %173 = vector.broadcast %cst_65 : f32 to vector<8x1xf32>
    %174 = arith.maximumf %172, %173 : vector<8x1xf32>
    %175 = arith.divf %163, %174 : vector<8x1xf32>
    %176 = vector.shape_cast %175 : vector<8x1xf32> to vector<1x8x1xf32>
    %cst_66 = arith.constant dense<0.000000e+00> : vector<1xf32>
    %177 = vector.multi_reduction <add>, %176, %cst_66 [1, 2] : vector<1x8x1xf32> to vector<1xf32>
    %178 = vector.shape_cast %177 : vector<1xf32> to vector<1x1x1xf32>
    %179 = vector.extract %178[0, 0, 0] : f32 from vector<1x1x1xf32>
    %cst_67 = arith.constant 1.250000e-01 : f32
    %180 = arith.mulf %179, %cst_67 : f32
    %181 = tpu.iota {dimensions = array<i32: 1>} : vector<1x128xi32>
    %c0_i32 = arith.constant 0 : i32
    %182 = vector.broadcast %c0_i32 : i32 to vector<1x128xi32>
    %183 = arith.cmpi eq, %181, %182 : vector<1x128xi32>
    %cst_68 = arith.constant 0.000000e+00 : f32
    %184 = vector.broadcast %160 : f32 to vector<1x128xf32>
    %185 = vector.broadcast %cst_68 : f32 to vector<1x128xf32>
    %186 = arith.select %183, %184, %185 : vector<1x128xi1>, vector<1x128xf32>
    %c1_i32 = arith.constant 1 : i32
    %187 = vector.broadcast %c1_i32 : i32 to vector<1x128xi32>
    %188 = arith.cmpi eq, %181, %187 : vector<1x128xi32>
    %cst_69 = arith.constant 0.000000e+00 : f32
    %189 = vector.broadcast %145 : f32 to vector<1x128xf32>
    %190 = vector.broadcast %cst_69 : f32 to vector<1x128xf32>
    %191 = arith.select %188, %189, %190 : vector<1x128xi1>, vector<1x128xf32>
    %192 = arith.addf %186, %191 : vector<1x128xf32>
    %c2_i32 = arith.constant 2 : i32
    %193 = vector.broadcast %c2_i32 : i32 to vector<1x128xi32>
    %194 = arith.cmpi eq, %181, %193 : vector<1x128xi32>
    %cst_70 = arith.constant 0.000000e+00 : f32
    %195 = vector.broadcast %180 : f32 to vector<1x128xf32>
    %196 = vector.broadcast %cst_70 : f32 to vector<1x128xf32>
    %197 = arith.select %194, %195, %196 : vector<1x128xi1>, vector<1x128xf32>
    %198 = arith.addf %192, %197 : vector<1x128xf32>
    %c3_i32 = arith.constant 3 : i32
    %199 = vector.broadcast %c3_i32 : i32 to vector<1x128xi32>
    %200 = arith.cmpi eq, %181, %199 : vector<1x128xi32>
    %cst_71 = arith.constant 0.000000e+00 : f32
    %201 = vector.broadcast %150 : f32 to vector<1x128xf32>
    %202 = vector.broadcast %cst_71 : f32 to vector<1x128xf32>
    %203 = arith.select %200, %201, %202 : vector<1x128xi1>, vector<1x128xf32>
    %204 = arith.addf %198, %203 : vector<1x128xf32>
    %c0_72 = arith.constant 0 : index
    %c0_73 = arith.constant 0 : index
    %205 = vector.load %arg7[%c0_72, %c0_73] : memref<1x128xf32, #tpu.memory_space<vmem>>, vector<1x128xf32>
    tpu.vector_store %arg7[%c0_72, %c0_73], %204 {strides = array<i32>} : memref<1x128xf32, #tpu.memory_space<vmem>>, vector<1x128xf32>,
    return
  }
}

</mosaic_0001>

<llo_original>
// kernel: quantum_security_forward.1
$region0: #{quantum_security_forward.1}
  #allocation0 [shape = 'u32[]', space=smem, size = 0x4, offset = 0x4, fixed_abs, tag = 'smem constant byte address 0x4 - core index']
  #allocation1 [shape = 'u32[144,128]{1,0:T(1,128)}', space=vmem, size = 0x12000, scoped, tag = 'internal scratch']
  %s0 = inlined_call_operand.vmem [shape: f32[8,128], index: 0, kind: input, shape index: {}]
  %s1 = inlined_call_operand.hbm [shape: bf16[128,128], index: 1, kind: input, shape index: {}]
  %s2 = inlined_call_operand.hbm [shape: bf16[3,128,128], index: 2, kind: input, shape index: {}]
  %s3 = inlined_call_operand.hbm [shape: f32[12,128], index: 3, kind: input, shape index: {}]
  %s4 = inlined_call_operand.hbm [shape: bf16[128,128], index: 4, kind: input, shape index: {}]
  %s5 = inlined_call_operand.hbm [shape: f32[1,128], index: 5, kind: input, shape index: {}]
  %s6 = inlined_call_operand.hbm [shape: f32[8,128], index: 6, kind: output, shape index: {0}]
  %s7 = inlined_call_operand.vmem [shape: f32[1,128], index: 7, kind: output, shape index: {1}]
  %8 = xla_tuple %s6, %s7
  %s9 = sld [smem:[#allocation0]]
  $region62: #{quantum_security_forward.1} parent=0
    _
  %s11 = ssub.s32 1, %s9
  %s12 = scalar_select 0, %s11, %s9
  $region1: #{quantum_security_forward.1} parent=0
    #allocation2 [shape = 'u8[32768]{0}', space=vmem, size = 0x8000, scoped, tag = 'input window, operand 1, single buffered']
    #allocation3 [shape = 's32[1]{0}', space=sflag, size = 0x4, scoped, tag = 'scoped memory for quantum_security_forward.1']
    #allocation4 [shape = 's32[1]{0}', space=sflag, size = 0x4, scoped, tag = 'scoped memory for quantum_security_forward.1']
    #allocation5 [shape = 'u8[98304]{0}', space=vmem, size = 0x18000, scoped, tag = 'input window, operand 2, single buffered']
    #allocation6 [shape = 's32[1]{0}', space=sflag, size = 0x4, scoped, tag = 'scoped memory for quantum_security_forward.1']
    #allocation7 [shape = 'u8[8192]{0}', space=vmem, size = 0x2000, scoped, tag = 'input window, operand 3, single buffered']
    #allocation8 [shape = 'u8[32768]{0}', space=vmem, size = 0x8000, scoped, tag = 'input window, operand 4, single buffered']
    #allocation9 [shape = 's32[1]{0}', space=sflag, size = 0x4, scoped, tag = 'scoped memory for quantum_security_forward.1']
    #allocation10 [shape = 'u8[512]{0}', space=vmem, size = 0x400, scoped, tag = 'input window, operand 5, single buffered']
    #allocation11 [shape = 'u8[4096]{0}', space=vmem, size = 0x1000, scoped, tag = 'output window, operand 0, single buffered']
    %13 = vsyncpa [#allocation3], 0
    %14 = vsyncpa [#allocation6], 0
    %15 = vsyncpa [#allocation9], 0
    %16 = vsyncpa [#allocation4], 0
    // Predicated region
    $region2: #{quantum_security_forward.1} parent=1 // pred_check
      _
    $region3: #{quantum_security_forward.1} parent=1 // pred_check_branch
      %18 = sbr.rel (0) target = $region5
    $region4: #{quantum_security_forward.1} parent=1 // pred_region
      _
    $region5: #{quantum_security_forward.1} parent=1 // pred_fallthru
      _
    // Predicated region
    $region6: #{quantum_security_forward.1} parent=1 // pred_check
      _
    $region7: #{quantum_security_forward.1} parent=1 // pred_check_branch
      %20 = sbr.rel (0) target = $region9
    $region8: #{quantum_security_forward.1} parent=1 // pred_region
      %s22 = ssub.s32 1024, 1024
      %23 = vsyncadd [#allocation3], %s22
      %s24 = sshll.u32 [#allocation2], 4
      %s25 = int_to_ptr.vmem [resolvable:$true] %s24
      %30 = dma.hbm_to_vmem [thread:$0]  %s1, 1024, %s25, [#allocation3], 64, 64, 4
    $region9: #{quantum_security_forward.1} parent=1 // pred_fallthru
      _
    // Predicated region
    $region10: #{quantum_security_forward.1} parent=1 // pred_check
      _
    $region11: #{quantum_security_forward.1} parent=1 // pred_check_branch
      %32 = sbr.rel (0) target = $region13
    $region12: #{quantum_security_forward.1} parent=1 // pred_region
      %s34 = ssub.s32 3072, 3072
      %35 = vsyncadd [#allocation6], %s34
      %s36 = sshll.u32 [#allocation5], 4
      %s37 = int_to_ptr.vmem [resolvable:$true] %s36
      %42 = dma.hbm_to_vmem [thread:$0]  %s2, 3072, %s37, [#allocation6], 64, 64, 4
    $region13: #{quantum_security_forward.1} parent=1 // pred_fallthru
      _
    // Predicated region
    $region14: #{quantum_security_forward.1} parent=1 // pred_check
      _
    $region15: #{quantum_security_forward.1} parent=1 // pred_check_branch
      %44 = sbr.rel (0) target = $region17
    $region16: #{quantum_security_forward.1} parent=1 // pred_region
      %s46 = ssub.s32 256, 256
      %47 = vsyncadd [#allocation6], %s46
      %s48 = sshll.u32 [#allocation7], 4
      %s49 = int_to_ptr.vmem [resolvable:$true] %s48
      %54 = dma.hbm_to_vmem [thread:$0]  %s3, 256, %s49, [#allocation6], 128, 128, 8
    $region17: #{quantum_security_forward.1} parent=1 // pred_fallthru
      _
    // Predicated region
    $region18: #{quantum_security_forward.1} parent=1 // pred_check
      _
    $region19: #{quantum_security_forward.1} parent=1 // pred_check_branch
      %56 = sbr.rel (0) target = $region21
    $region20: #{quantum_security_forward.1} parent=1 // pred_region
      %s58 = ssub.s32 1024, 1024
      %59 = vsyncadd [#allocation9], %s58
      %s60 = sshll.u32 [#allocation8], 4
      %s61 = int_to_ptr.vmem [resolvable:$true] %s60
      %66 = dma.hbm_to_vmem [thread:$0]  %s4, 1024, %s61, [#allocation9], 64, 64, 4
    $region21: #{quantum_security_forward.1} parent=1 // pred_fallthru
      _
    // Predicated region
    $region22: #{quantum_security_forward.1} parent=1 // pred_check
      _
    $region23: #{quantum_security_forward.1} parent=1 // pred_check_branch
      %68 = sbr.rel (0) target = $region25
    $region24: #{quantum_security_forward.1} parent=1 // pred_region
      %s70 = ssub.s32 16, 16
      %71 = vsyncadd [#allocation9], %s70
      %s73 = sshll.u32 [#allocation10], 4
      %s74 = int_to_ptr.vmem [resolvable:$true] %s73
      %76 = dma.hbm_to_vmem [thread:$0]  %s5, 16, %s74, [#allocation9]
    $region25: #{quantum_security_forward.1} parent=1 // pred_fallthru
      _
    // Predicated region
    $region26: #{quantum_security_forward.1} parent=1 // pred_check
      _
    $region27: #{quantum_security_forward.1} parent=1 // pred_check_branch
      %78 = sbr.rel (0) target = $region29
    $region28: #{quantum_security_forward.1} parent=1 // pred_region
      %79 = dma.done [#allocation3], 1024
    $region29: #{quantum_security_forward.1} parent=1 // pred_fallthru
      _
    // Predicated region
    $region30: #{quantum_security_forward.1} parent=1 // pred_check
      _
    $region31: #{quantum_security_forward.1} parent=1 // pred_check_branch
      %81 = sbr.rel (0) target = $region33
    $region32: #{quantum_security_forward.1} parent=1 // pred_region
      %82 = dma.done [#allocation6], 3072
    $region33: #{quantum_security_forward.1} parent=1 // pred_fallthru
      _
    // Predicated region
    $region34: #{quantum_security_forward.1} parent=1 // pred_check
      _
    $region35: #{quantum_security_forward.1} parent=1 // pred_check_branch
      %84 = sbr.rel (0) target = $region37
    $region36: #{quantum_security_forward.1} parent=1 // pred_region
      %85 = dma.done [#allocation6], 256
    $region37: #{quantum_security_forward.1} parent=1 // pred_fallthru
      _
    // Predicated region
    $region38: #{quantum_security_forward.1} parent=1 // pred_check
      _
    $region39: #{quantum_security_forward.1} parent=1 // pred_check_branch
      %87 = sbr.rel (0) target = $region41
    $region40: #{quantum_security_forward.1} parent=1 // pred_region
      %88 = dma.done [#allocation9], 1024
    $region41: #{quantum_security_forward.1} parent=1 // pred_fallthru
      _
    // Predicated region
    $region42: #{quantum_security_forward.1} parent=1 // pred_check
      _
    $region43: #{quantum_security_forward.1} parent=1 // pred_check_branch
      %90 = sbr.rel (0) target = $region45
    $region44: #{quantum_security_forward.1} parent=1 // pred_region
      %91 = dma.done [#allocation9], 16
    $region45: #{quantum_security_forward.1} parent=1 // pred_fallthru
      _
    %v93 = vld [vmem:[%s0] sm:$0xff]
    %v94 = vpack.c.bf16 %v93, %v93
    %v95 = vld [vmem:[#allocation2] sm:$0xf]
    %v96 = vld [vmem:[#allocation2 + $0x4] sm:$0xf]
    %v97 = vld [vmem:[#allocation2 + $0x8] sm:$0xf]
    %v98 = vld [vmem:[#allocation2 + $0xc] sm:$0xf]
    %v99 = vld [vmem:[#allocation2 + $0x10] sm:$0xf]
    %v100 = vld [vmem:[#allocation2 + $0x14] sm:$0xf]
    %v101 = vld [vmem:[#allocation2 + $0x18] sm:$0xf]
    %v102 = vld [vmem:[#allocation2 + $0x1c] sm:$0xf]
    %v103 = vld [vmem:[#allocation2 + $0x20] sm:$0xf]
    %v104 = vld [vmem:[#allocation2 + $0x24] sm:$0xf]
    %v105 = vld [vmem:[#allocation2 + $0x28] sm:$0xf]
    %v106 = vld [vmem:[#allocation2 + $0x2c] sm:$0xf]
    %v107 = vld [vmem:[#allocation2 + $0x30] sm:$0xf]
    %v108 = vld [vmem:[#allocation2 + $0x34] sm:$0xf]
    %v109 = vld [vmem:[#allocation2 + $0x38] sm:$0xf]
    %v110 = vld [vmem:[#allocation2 + $0x3c] sm:$0xf]
    %v111 = vld [vmem:[#allocation7] sm:$0x1]
    %v112 = vld [vmem:[#allocation7 + $0x1] sm:$0x1]
    %v113 = vld [vmem:[#allocation7 + $0x2] sm:$0x1]
    %v114 = vlaneseq
    %v115 = vshrl.u32 %v114, 7
    %v116 = vsub.s32 0, %v115
    %v117 = vrot.slane %v111, %v116
    %v134 = vunpack.c.l.b16 %v95
    %v135 = vunpack.c.l.b16 %v96
    %v136 = vunpack.c.l.b16 %v97
    %v137 = vunpack.c.l.b16 %v98
    %v138 = vunpack.c.l.b16 %v99
    %v139 = vunpack.c.l.b16 %v100
    %v140 = vunpack.c.l.b16 %v101
    %v141 = vunpack.c.l.b16 %v102
    %v142 = vunpack.c.l.b16 %v103
    %v143 = vunpack.c.l.b16 %v104
    %v144 = vunpack.c.l.b16 %v105
    %v145 = vunpack.c.l.b16 %v106
    %v146 = vunpack.c.l.b16 %v107
    %v147 = vunpack.c.l.b16 %v108
    %v148 = vunpack.c.l.b16 %v109
    %v149 = vunpack.c.l.b16 %v110
    %v150 = vpack.c.b16 %v135, %v134
    %v151 = vpack.c.b16 %v137, %v136
    %v152 = vpack.c.b16 %v139, %v138
    %v153 = vpack.c.b16 %v141, %v140
    %v154 = vpack.c.b16 %v143, %v142
    %v155 = vpack.c.b16 %v145, %v144
    %v156 = vpack.c.b16 %v147, %v146
    %v157 = vpack.c.b16 %v149, %v148
    %166 = vmatprep.subr.bf16.mxu0 0
    %167 = vmatpush1.bf16.msra.mxu0 %v157
    %168 = vmatprep.subr.bf16.mxu0 0
    %169 = vmatpush1.bf16.msra.mxu0 %v156
    %170 = vmatprep.subr.bf16.mxu0 0
    %171 = vmatpush1.bf16.msra.mxu0 %v155
    %172 = vmatprep.subr.bf16.mxu0 0
    %173 = vmatpush1.bf16.msra.mxu0 %v154
    %174 = vmatprep.subr.bf16.mxu0 0
    %175 = vmatpush1.bf16.msra.mxu0 %v153
    %176 = vmatprep.subr.bf16.mxu0 0
    %177 = vmatpush1.bf16.msra.mxu0 %v152
    %178 = vmatprep.subr.bf16.mxu0 0
    %179 = vmatpush1.bf16.msra.mxu0 %v151
    %180 = vmatprep.subr.bf16.mxu0 0
    %181 = vmatpush1.bf16.msra.mxu0 %v150
    %182 = vmatprep.subr.bf16.mxu0 0
    %183 = vmatpush2.bf16.msra.mxu0 0
    %184 = vmatprep.subr.bf16.mxu0 0
    %185 = vmatpush2.bf16.msra.mxu0 0
    %186 = vmatprep.subr.bf16.mxu0 0
    %187 = vmatpush2.bf16.msra.mxu0 0
    %188 = vmatprep.subr.bf16.mxu0 0
    %189 = vmatpush2.bf16.msra.mxu0 0
    %190 = vmatprep.subr.bf16.mxu0 0
    %191 = vmatpush2.bf16.msra.mxu0 0
    %192 = vmatprep.subr.bf16.mxu0 0
    %193 = vmatpush2.bf16.msra.mxu0 0
    %194 = vmatprep.subr.bf16.mxu0 0
    %195 = vmatpush2.bf16.msra.mxu0 0
    %196 = vmatprep.subr.bf16.mxu0 0
    %197 = vmatpush2.bf16.msra.mxu0 0
    %198 = vmatprep.mubr.bf16.mxu0 0
    %199 = vmatmul.mubr.bf16.gmra.mxu0 %v94
    %v200 = vpop.f32.mrf.mxu0
    %v201 = vadd.f32 %v117, %v200
    %v202 = vpop.f32.mrf.mxu0
    %v203 = vpop.f32.mrf.mxu0
    %v204 = vpop.f32.mrf.mxu0
    %205 = vdwg.mxu0
    %v206 = vand.u32 2147483647, %v201
    %207 = vadd.xlane.f32.xlu0 %v206
    %v208 = vpop.xlane.xlu0 %207
    %v209 = vmul.f32 %v206, %v206
    %210 = vadd.xlane.f32.xlu0 %v209
    %v211 = vpop.xlane.xlu0 %210
    %v212 = vmul.f32 %v208, 0.0078125
    %v213 = vmul.f32 %v211, 0.0078125
    %v214 = vmul.f32 %v212, %v212
    %v215 = vsub.f32 %v213, %v214
    %v216 = vsub.f32 %v206, %v212
    %v217 = vadd.f32 %v215, 1e-05
    %v218 = vrsqrt.pop %v217
    %v219 = vmul.f32 %v216, %v218
    %v220 = vlaneseq
    %v221 = vshrl.u32 %v220, 7
    %v222 = vsub.s32 0, %v221
    %v223 = vrot.slane %v112, %v222
    %v224 = vmul.f32 %v219, %v223
    %v225 = vlaneseq
    %v226 = vshrl.u32 %v225, 7
    %v227 = vsub.s32 0, %v226
    %v228 = vrot.slane %v113, %v227
    %v229 = vadd.f32 %v224, %v228
    %v230 = vpack.c.bf16 %v229, %v229
    %v231 = vld [vmem:[#allocation5] sm:$0xf]
    %v232 = vld [vmem:[#allocation5 + $0x4] sm:$0xf]
    %v233 = vld [vmem:[#allocation5 + $0x8] sm:$0xf]
    %v234 = vld [vmem:[#allocation5 + $0xc] sm:$0xf]
    %v235 = vld [vmem:[#allocation5 + $0x10] sm:$0xf]
    %v236 = vld [vmem:[#allocation5 + $0x14] sm:$0xf]
    %v237 = vld [vmem:[#allocation5 + $0x18] sm:$0xf]
    %v238 = vld [vmem:[#allocation5 + $0x1c] sm:$0xf]
    %v239 = vld [vmem:[#allocation5 + $0x20] sm:$0xf]
    %v240 = vld [vmem:[#allocation5 + $0x24] sm:$0xf]
    %v241 = vld [vmem:[#allocation5 + $0x28] sm:$0xf]
    %v242 = vld [vmem:[#allocation5 + $0x2c] sm:$0xf]
    %v243 = vld [vmem:[#allocation5 + $0x30] sm:$0xf]
    %v244 = vld [vmem:[#allocation5 + $0x34] sm:$0xf]
    %v245 = vld [vmem:[#allocation5 + $0x38] sm:$0xf]
    %v246 = vld [vmem:[#allocation5 + $0x3c] sm:$0xf]
    %v247 = vld [vmem:[#allocation7 + $0x3] sm:$0x1]
    %v248 = vld [vmem:[#allocation7 + $0x4] sm:$0x1]
    %v249 = vld [vmem:[#allocation7 + $0x5] sm:$0x1]
    %v250 = vlaneseq
    %v251 = vshrl.u32 %v250, 7
    %v252 = vsub.s32 0, %v251
    %v253 = vrot.slane %v247, %v252
    %v270 = vunpack.c.l.b16 %v231
    %v271 = vunpack.c.l.b16 %v232
    %v272 = vunpack.c.l.b16 %v233
    %v273 = vunpack.c.l.b16 %v234
    %v274 = vunpack.c.l.b16 %v235
    %v275 = vunpack.c.l.b16 %v236
    %v276 = vunpack.c.l.b16 %v237
    %v277 = vunpack.c.l.b16 %v238
    %v278 = vunpack.c.l.b16 %v239
    %v279 = vunpack.c.l.b16 %v240
    %v280 = vunpack.c.l.b16 %v241
    %v281 = vunpack.c.l.b16 %v242
    %v282 = vunpack.c.l.b16 %v243
    %v283 = vunpack.c.l.b16 %v244
    %v284 = vunpack.c.l.b16 %v245
    %v285 = vunpack.c.l.b16 %v246
    %v286 = vpack.c.b16 %v271, %v270
    %v287 = vpack.c.b16 %v273, %v272
    %v288 = vpack.c.b16 %v275, %v274
    %v289 = vpack.c.b16 %v277, %v276
    %v290 = vpack.c.b16 %v279, %v278
    %v291 = vpack.c.b16 %v281, %v280
    %v292 = vpack.c.b16 %v283, %v282
    %v293 = vpack.c.b16 %v285, %v284
    %302 = vmatprep.subr.bf16.mxu0 0
    %303 = vmatpush1.bf16.msra.mxu0 %v293
    %304 = vmatprep.subr.bf16.mxu0 0
    %305 = vmatpush1.bf16.msra.mxu0 %v292
    %306 = vmatprep.subr.bf16.mxu0 0
    %307 = vmatpush1.bf16.msra.mxu0 %v291
    %308 = vmatprep.subr.bf16.mxu0 0
    %309 = vmatpush1.bf16.msra.mxu0 %v290
    %310 = vmatprep.subr.bf16.mxu0 0
    %311 = vmatpush1.bf16.msra.mxu0 %v289
    %312 = vmatprep.subr.bf16.mxu0 0
    %313 = vmatpush1.bf16.msra.mxu0 %v288
    %314 = vmatprep.subr.bf16.mxu0 0
    %315 = vmatpush1.bf16.msra.mxu0 %v287
    %316 = vmatprep.subr.bf16.mxu0 0
    %317 = vmatpush1.bf16.msra.mxu0 %v286
    %318 = vmatprep.subr.bf16.mxu0 0
    %319 = vmatpush2.bf16.msra.mxu0 0
    %320 = vmatprep.subr.bf16.mxu0 0
    %321 = vmatpush2.bf16.msra.mxu0 0
    %322 = vmatprep.subr.bf16.mxu0 0
    %323 = vmatpush2.bf16.msra.mxu0 0
    %324 = vmatprep.subr.bf16.mxu0 0
    %325 = vmatpush2.bf16.msra.mxu0 0
    %326 = vmatprep.subr.bf16.mxu0 0
    %327 = vmatpush2.bf16.msra.mxu0 0
    %328 = vmatprep.subr.bf16.mxu0 0
    %329 = vmatpush2.bf16.msra.mxu0 0
    %330 = vmatprep.subr.bf16.mxu0 0
    %331 = vmatpush2.bf16.msra.mxu0 0
    %332 = vmatprep.subr.bf16.mxu0 0
    %333 = vmatpush2.bf16.msra.mxu0 0
    %334 = vmatprep.mubr.bf16.mxu0 0
    %335 = vmatmul.mubr.bf16.gmra.mxu0 %v230
    %v336 = vpop.f32.mrf.mxu0
    %v337 = vadd.f32 %v253, %v336
    %v338 = vpop.f32.mrf.mxu0
    %v339 = vpop.f32.mrf.mxu0
    %v340 = vpop.f32.mrf.mxu0
    %341 = vdwg.mxu0
    %v342 = vand.u32 2147483647, %v337
    %343 = vadd.xlane.f32.xlu0 %v342
    %v344 = vpop.xlane.xlu0 %343
    %v345 = vmul.f32 %v342, %v342
    %346 = vadd.xlane.f32.xlu0 %v345
    %v347 = vpop.xlane.xlu0 %346
    %v348 = vmul.f32 %v344, 0.0078125
    %v349 = vmul.f32 %v347, 0.0078125
    %v350 = vmul.f32 %v348, %v348
    %v351 = vsub.f32 %v349, %v350
    %v352 = vsub.f32 %v342, %v348
    %v353 = vadd.f32 %v351, 1e-05
    %v354 = vrsqrt.pop %v353
    %v355 = vmul.f32 %v352, %v354
    %v356 = vlaneseq
    %v357 = vshrl.u32 %v356, 7
    %v358 = vsub.s32 0, %v357
    %v359 = vrot.slane %v248, %v358
    %v360 = vmul.f32 %v355, %v359
    %v361 = vlaneseq
    %v362 = vshrl.u32 %v361, 7
    %v363 = vsub.s32 0, %v362
    %v364 = vrot.slane %v249, %v363
    %v365 = vadd.f32 %v360, %v364
    %v366 = vadd.f32 %v208, %v344
    %v367 = vadd.f32 %v229, %v365
    %v368 = vpack.c.bf16 %v365, %v365
    %s369 = scalar_lea.vmem [#allocation5], 64
    %v370 = vld [vmem:[%s369] sm:$0xf]
    %v371 = vld [vmem:[%s369 + $0x4] sm:$0xf]
    %v372 = vld [vmem:[%s369 + $0x8] sm:$0xf]
    %v373 = vld [vmem:[%s369 + $0xc] sm:$0xf]
    %v374 = vld [vmem:[%s369 + $0x10] sm:$0xf]
    %v375 = vld [vmem:[%s369 + $0x14] sm:$0xf]
    %v376 = vld [vmem:[%s369 + $0x18] sm:$0xf]
    %v377 = vld [vmem:[%s369 + $0x1c] sm:$0xf]
    %v378 = vld [vmem:[%s369 + $0x20] sm:$0xf]
    %v379 = vld [vmem:[%s369 + $0x24] sm:$0xf]
    %v380 = vld [vmem:[%s369 + $0x28] sm:$0xf]
    %v381 = vld [vmem:[%s369 + $0x2c] sm:$0xf]
    %v382 = vld [vmem:[%s369 + $0x30] sm:$0xf]
    %v383 = vld [vmem:[%s369 + $0x34] sm:$0xf]
    %v384 = vld [vmem:[%s369 + $0x38] sm:$0xf]
    %v385 = vld [vmem:[%s369 + $0x3c] sm:$0xf]
    %v386 = vld [vmem:[#allocation7 + $0x6] sm:$0x1]
    %v387 = vld [vmem:[#allocation7 + $0x7] sm:$0x1]
    %v388 = vld [vmem:[#allocation7 + $0x8] sm:$0x1]
    %v389 = vlaneseq
    %v390 = vshrl.u32 %v389, 7
    %v391 = vsub.s32 0, %v390
    %v392 = vrot.slane %v386, %v391
    %v409 = vunpack.c.l.b16 %v370
    %v410 = vunpack.c.l.b16 %v371
    %v411 = vunpack.c.l.b16 %v372
    %v412 = vunpack.c.l.b16 %v373
    %v413 = vunpack.c.l.b16 %v374
    %v414 = vunpack.c.l.b16 %v375
    %v415 = vunpack.c.l.b16 %v376
    %v416 = vunpack.c.l.b16 %v377
    %v417 = vunpack.c.l.b16 %v378
    %v418 = vunpack.c.l.b16 %v379
    %v419 = vunpack.c.l.b16 %v380
    %v420 = vunpack.c.l.b16 %v381
    %v421 = vunpack.c.l.b16 %v382
    %v422 = vunpack.c.l.b16 %v383
    %v423 = vunpack.c.l.b16 %v384
    %v424 = vunpack.c.l.b16 %v385
    %v425 = vpack.c.b16 %v410, %v409
    %v426 = vpack.c.b16 %v412, %v411
    %v427 = vpack.c.b16 %v414, %v413
    %v428 = vpack.c.b16 %v416, %v415
    %v429 = vpack.c.b16 %v418, %v417
    %v430 = vpack.c.b16 %v420, %v419
    %v431 = vpack.c.b16 %v422, %v421
    %v432 = vpack.c.b16 %v424, %v423
    %441 = vmatprep.subr.bf16.mxu0 0
    %442 = vmatpush1.bf16.msra.mxu0 %v432
    %443 = vmatprep.subr.bf16.mxu0 0
    %444 = vmatpush1.bf16.msra.mxu0 %v431
    %445 = vmatprep.subr.bf16.mxu0 0
    %446 = vmatpush1.bf16.msra.mxu0 %v430
    %447 = vmatprep.subr.bf16.mxu0 0
    %448 = vmatpush1.bf16.msra.mxu0 %v429
    %449 = vmatprep.subr.bf16.mxu0 0
    %450 = vmatpush1.bf16.msra.mxu0 %v428
    %451 = vmatprep.subr.bf16.mxu0 0
    %452 = vmatpush1.bf16.msra.mxu0 %v427
    %453 = vmatprep.subr.bf16.mxu0 0
    %454 = vmatpush1.bf16.msra.mxu0 %v426
    %455 = vmatprep.subr.bf16.mxu0 0
    %456 = vmatpush1.bf16.msra.mxu0 %v425
    %457 = vmatprep.subr.bf16.mxu0 0
    %458 = vmatpush2.bf16.msra.mxu0 0
    %459 = vmatprep.subr.bf16.mxu0 0
    %460 = vmatpush2.bf16.msra.mxu0 0
    %461 = vmatprep.subr.bf16.mxu0 0
    %462 = vmatpush2.bf16.msra.mxu0 0
    %463 = vmatprep.subr.bf16.mxu0 0
    %464 = vmatpush2.bf16.msra.mxu0 0
    %465 = vmatprep.subr.bf16.mxu0 0
    %466 = vmatpush2.bf16.msra.mxu0 0
    %467 = vmatprep.subr.bf16.mxu0 0
    %468 = vmatpush2.bf16.msra.mxu0 0
    %469 = vmatprep.subr.bf16.mxu0 0
    %470 = vmatpush2.bf16.msra.mxu0 0
    %471 = vmatprep.subr.bf16.mxu0 0
    %472 = vmatpush2.bf16.msra.mxu0 0
    %473 = vmatprep.mubr.bf16.mxu0 0
    %474 = vmatmul.mubr.bf16.gmra.mxu0 %v368
    %v475 = vpop.f32.mrf.mxu0
    %v476 = vadd.f32 %v392, %v475
    %v477 = vpop.f32.mrf.mxu0
    %v478 = vpop.f32.mrf.mxu0
    %v479 = vpop.f32.mrf.mxu0
    %480 = vdwg.mxu0
    %v481 = vand.u32 2147483647, %v476
    %482 = vadd.xlane.f32.xlu0 %v481
    %v483 = vpop.xlane.xlu0 %482
    %v484 = vmul.f32 %v481, %v481
    %485 = vadd.xlane.f32.xlu0 %v484
    %v486 = vpop.xlane.xlu0 %485
    %v487 = vmul.f32 %v483, 0.0078125
    %v488 = vmul.f32 %v486, 0.0078125
    %v489 = vmul.f32 %v487, %v487
    %v490 = vsub.f32 %v488, %v489
    %v491 = vsub.f32 %v481, %v487
    %v492 = vadd.f32 %v490, 1e-05
    %v493 = vrsqrt.pop %v492
    %v494 = vmul.f32 %v491, %v493
    %v495 = vlaneseq
    %v496 = vshrl.u32 %v495, 7
    %v497 = vsub.s32 0, %v496
    %v498 = vrot.slane %v387, %v497
    %v499 = vmul.f32 %v494, %v498
    %v500 = vlaneseq
    %v501 = vshrl.u32 %v500, 7
    %v502 = vsub.s32 0, %v501
    %v503 = vrot.slane %v388, %v502
    %v504 = vadd.f32 %v499, %v503
    %v505 = vadd.f32 %v366, %v483
    %v506 = vadd.f32 %v367, %v504
    %v507 = vpack.c.bf16 %v504, %v504
    %s508 = scalar_lea.vmem [#allocation5], 128
    %v509 = vld [vmem:[%s508] sm:$0xf]
    %v510 = vld [vmem:[%s508 + $0x4] sm:$0xf]
    %v511 = vld [vmem:[%s508 + $0x8] sm:$0xf]
    %v512 = vld [vmem:[%s508 + $0xc] sm:$0xf]
    %v513 = vld [vmem:[%s508 + $0x10] sm:$0xf]
    %v514 = vld [vmem:[%s508 + $0x14] sm:$0xf]
    %v515 = vld [vmem:[%s508 + $0x18] sm:$0xf]
    %v516 = vld [vmem:[%s508 + $0x1c] sm:$0xf]
    %v517 = vld [vmem:[%s508 + $0x20] sm:$0xf]
    %v518 = vld [vmem:[%s508 + $0x24] sm:$0xf]
    %v519 = vld [vmem:[%s508 + $0x28] sm:$0xf]
    %v520 = vld [vmem:[%s508 + $0x2c] sm:$0xf]
    %v521 = vld [vmem:[%s508 + $0x30] sm:$0xf]
    %v522 = vld [vmem:[%s508 + $0x34] sm:$0xf]
    %v523 = vld [vmem:[%s508 + $0x38] sm:$0xf]
    %v524 = vld [vmem:[%s508 + $0x3c] sm:$0xf]
    %v525 = vld [vmem:[#allocation7 + $0x9] sm:$0x1]
    %v526 = vld [vmem:[#allocation7 + $0xa] sm:$0x1]
    %v527 = vld [vmem:[#allocation7 + $0xb] sm:$0x1]
    %v528 = vlaneseq
    %v529 = vshrl.u32 %v528, 7
    %v530 = vsub.s32 0, %v529
    %v531 = vrot.slane %v525, %v530
    %v548 = vunpack.c.l.b16 %v509
    %v549 = vunpack.c.l.b16 %v510
    %v550 = vunpack.c.l.b16 %v511
    %v551 = vunpack.c.l.b16 %v512
    %v552 = vunpack.c.l.b16 %v513
    %v553 = vunpack.c.l.b16 %v514
    %v554 = vunpack.c.l.b16 %v515
    %v555 = vunpack.c.l.b16 %v516
    %v556 = vunpack.c.l.b16 %v517
    %v557 = vunpack.c.l.b16 %v518
    %v558 = vunpack.c.l.b16 %v519
    %v559 = vunpack.c.l.b16 %v520
    %v560 = vunpack.c.l.b16 %v521
    %v561 = vunpack.c.l.b16 %v522
    %v562 = vunpack.c.l.b16 %v523
    %v563 = vunpack.c.l.b16 %v524
    %v564 = vpack.c.b16 %v549, %v548
    %v565 = vpack.c.b16 %v551, %v550
    %v566 = vpack.c.b16 %v553, %v552
    %v567 = vpack.c.b16 %v555, %v554
    %v568 = vpack.c.b16 %v557, %v556
    %v569 = vpack.c.b16 %v559, %v558
    %v570 = vpack.c.b16 %v561, %v560
    %v571 = vpack.c.b16 %v563, %v562
    %580 = vmatprep.subr.bf16.mxu0 0
    %581 = vmatpush1.bf16.msra.mxu0 %v571
    %582 = vmatprep.subr.bf16.mxu0 0
    %583 = vmatpush1.bf16.msra.mxu0 %v570
    %584 = vmatprep.subr.bf16.mxu0 0
    %585 = vmatpush1.bf16.msra.mxu0 %v569
    %586 = vmatprep.subr.bf16.mxu0 0
    %587 = vmatpush1.bf16.msra.mxu0 %v568
    %588 = vmatprep.subr.bf16.mxu0 0
    %589 = vmatpush1.bf16.msra.mxu0 %v567
    %590 = vmatprep.subr.bf16.mxu0 0
    %591 = vmatpush1.bf16.msra.mxu0 %v566
    %592 = vmatprep.subr.bf16.mxu0 0
    %593 = vmatpush1.bf16.msra.mxu0 %v565
    %594 = vmatprep.subr.bf16.mxu0 0
    %595 = vmatpush1.bf16.msra.mxu0 %v564
    %596 = vmatprep.subr.bf16.mxu0 0
    %597 = vmatpush2.bf16.msra.mxu0 0
    %598 = vmatprep.subr.bf16.mxu0 0
    %599 = vmatpush2.bf16.msra.mxu0 0
    %600 = vmatprep.subr.bf16.mxu0 0
    %601 = vmatpush2.bf16.msra.mxu0 0
    %602 = vmatprep.subr.bf16.mxu0 0
    %603 = vmatpush2.bf16.msra.mxu0 0
    %604 = vmatprep.subr.bf16.mxu0 0
    %605 = vmatpush2.bf16.msra.mxu0 0
    %606 = vmatprep.subr.bf16.mxu0 0
    %607 = vmatpush2.bf16.msra.mxu0 0
    %608 = vmatprep.subr.bf16.mxu0 0
    %609 = vmatpush2.bf16.msra.mxu0 0
    %610 = vmatprep.subr.bf16.mxu0 0
    %611 = vmatpush2.bf16.msra.mxu0 0
    %612 = vmatprep.mubr.bf16.mxu0 0
    %613 = vmatmul.mubr.bf16.gmra.mxu0 %v507
    %v614 = vpop.f32.mrf.mxu0
    %v615 = vadd.f32 %v531, %v614
    %v616 = vpop.f32.mrf.mxu0
    %v617 = vpop.f32.mrf.mxu0
    %v618 = vpop.f32.mrf.mxu0
    %619 = vdwg.mxu0
    %v620 = vand.u32 2147483647, %v615
    %621 = vadd.xlane.f32.xlu0 %v620
    %v622 = vpop.xlane.xlu0 %621
    %v623 = vmul.f32 %v620, %v620
    %624 = vadd.xlane.f32.xlu0 %v623
    %v625 = vpop.xlane.xlu0 %624
    %v626 = vmul.f32 %v622, 0.0078125
    %v627 = vmul.f32 %v625, 0.0078125
    %v628 = vmul.f32 %v626, %v626
    %v629 = vsub.f32 %v627, %v628
    %v630 = vsub.f32 %v620, %v626
    %v631 = vadd.f32 %v629, 1e-05
    %v632 = vrsqrt.pop %v631
    %v633 = vmul.f32 %v630, %v632
    %v634 = vlaneseq
    %v635 = vshrl.u32 %v634, 7
    %v636 = vsub.s32 0, %v635
    %v637 = vrot.slane %v526, %v636
    %v638 = vmul.f32 %v633, %v637
    %v639 = vlaneseq
    %v640 = vshrl.u32 %v639, 7
    %v641 = vsub.s32 0, %v640
    %v642 = vrot.slane %v527, %v641
    %v643 = vadd.f32 %v638, %v642
    %v644 = vadd.f32 %v505, %v622
    %v645 = vadd.f32 %v506, %v643
    %v646 = vpack.c.bf16 %v643, %v643
    %v647 = vld [vmem:[#allocation8] sm:$0xf]
    %v648 = vld [vmem:[#allocation8 + $0x4] sm:$0xf]
    %v649 = vld [vmem:[#allocation8 + $0x8] sm:$0xf]
    %v650 = vld [vmem:[#allocation8 + $0xc] sm:$0xf]
    %v651 = vld [vmem:[#allocation8 + $0x10] sm:$0xf]
    %v652 = vld [vmem:[#allocation8 + $0x14] sm:$0xf]
    %v653 = vld [vmem:[#allocation8 + $0x18] sm:$0xf]
    %v654 = vld [vmem:[#allocation8 + $0x1c] sm:$0xf]
    %v655 = vld [vmem:[#allocation8 + $0x20] sm:$0xf]
    %v656 = vld [vmem:[#allocation8 + $0x24] sm:$0xf]
    %v657 = vld [vmem:[#allocation8 + $0x28] sm:$0xf]
    %v658 = vld [vmem:[#allocation8 + $0x2c] sm:$0xf]
    %v659 = vld [vmem:[#allocation8 + $0x30] sm:$0xf]
    %v660 = vld [vmem:[#allocation8 + $0x34] sm:$0xf]
    %v661 = vld [vmem:[#allocation8 + $0x38] sm:$0xf]
    %v662 = vld [vmem:[#allocation8 + $0x3c] sm:$0xf]
    %v663 = vld [vmem:[#allocation10] sm:$0x1]
    %v665 = vlaneseq
    %v666 = vshrl.u32 %v665, 7
    %v667 = vsub.s32 0, %v666
    %v668 = vrot.slane %v663, %v667
    %v686 = vunpack.c.l.b16 %v647
    %v687 = vunpack.c.l.b16 %v648
    %v688 = vunpack.c.l.b16 %v649
    %v689 = vunpack.c.l.b16 %v650
    %v690 = vunpack.c.l.b16 %v651
    %v691 = vunpack.c.l.b16 %v652
    %v692 = vunpack.c.l.b16 %v653
    %v693 = vunpack.c.l.b16 %v654
    %v694 = vunpack.c.l.b16 %v655
    %v695 = vunpack.c.l.b16 %v656
    %v696 = vunpack.c.l.b16 %v657
    %v697 = vunpack.c.l.b16 %v658
    %v698 = vunpack.c.l.b16 %v659
    %v699 = vunpack.c.l.b16 %v660
    %v700 = vunpack.c.l.b16 %v661
    %v701 = vunpack.c.l.b16 %v662
    %v702 = vpack.c.b16 %v687, %v686
    %v703 = vpack.c.b16 %v689, %v688
    %v704 = vpack.c.b16 %v691, %v690
    %v705 = vpack.c.b16 %v693, %v692
    %v706 = vpack.c.b16 %v695, %v694
    %v707 = vpack.c.b16 %v697, %v696
    %v708 = vpack.c.b16 %v699, %v698
    %v709 = vpack.c.b16 %v701, %v700
    %718 = vmatprep.subr.bf16.mxu0 0
    %719 = vmatpush1.bf16.msra.mxu0 %v709
    %720 = vmatprep.subr.bf16.mxu0 0
    %721 = vmatpush1.bf16.msra.mxu0 %v708
    %722 = vmatprep.subr.bf16.mxu0 0
    %723 = vmatpush1.bf16.msra.mxu0 %v707
    %724 = vmatprep.subr.bf16.mxu0 0
    %725 = vmatpush1.bf16.msra.mxu0 %v706
    %726 = vmatprep.subr.bf16.mxu0 0
    %727 = vmatpush1.bf16.msra.mxu0 %v705
    %728 = vmatprep.subr.bf16.mxu0 0
    %729 = vmatpush1.bf16.msra.mxu0 %v704
    %730 = vmatprep.subr.bf16.mxu0 0
    %731 = vmatpush1.bf16.msra.mxu0 %v703
    %732 = vmatprep.subr.bf16.mxu0 0
    %733 = vmatpush1.bf16.msra.mxu0 %v702
    %734 = vmatprep.subr.bf16.mxu0 0
    %735 = vmatpush2.bf16.msra.mxu0 0
    %736 = vmatprep.subr.bf16.mxu0 0
    %737 = vmatpush2.bf16.msra.mxu0 0
    %738 = vmatprep.subr.bf16.mxu0 0
    %739 = vmatpush2.bf16.msra.mxu0 0
    %740 = vmatprep.subr.bf16.mxu0 0
    %741 = vmatpush2.bf16.msra.mxu0 0
    %742 = vmatprep.subr.bf16.mxu0 0
    %743 = vmatpush2.bf16.msra.mxu0 0
    %744 = vmatprep.subr.bf16.mxu0 0
    %745 = vmatpush2.bf16.msra.mxu0 0
    %746 = vmatprep.subr.bf16.mxu0 0
    %747 = vmatpush2.bf16.msra.mxu0 0
    %748 = vmatprep.subr.bf16.mxu0 0
    %749 = vmatpush2.bf16.msra.mxu0 0
    %750 = vmatprep.mubr.bf16.mxu0 0
    %751 = vmatmul.mubr.bf16.gmra.mxu0 %v646
    %v752 = vpop.f32.mrf.mxu0
    %v753 = vadd.f32 %v668, %v752
    %v754 = vpop.f32.mrf.mxu0
    %v755 = vpop.f32.mrf.mxu0
    %v756 = vpop.f32.mrf.mxu0
    %757 = vdwg.mxu0
    %758 = vst [vmem:[#allocation11] sm:$0xff] %v753
    %vm759 = vcmask 7168
    %v760 = vsel %vm759, %v644, 0.0
    %761 = vadd.xlane.f32.xlu0 %v760
    %v762 = vpop.xlane.xlu0 %761
    %v763 = vrot.slane %v762, 4
    %v764 = vadd.f32 %v762, %v763
    %v765 = vrot.slane %v764, 2
    %v766 = vadd.f32 %v764, %v765
    %v767 = vrot.slane %v766, 1
    %v768 = vadd.f32 %v766, %v767
    %s769 = vtos %v768
    %s770 = smul.f32 %s769, 0.00024414063
    %771 = vadd.xlane.f32.xlu0 %v645
    %v772 = vpop.xlane.xlu0 %771
    %v773 = vrot.slane %v772, 4
    %v774 = vadd.f32 %v772, %v773
    %v775 = vrot.slane %v774, 2
    %v776 = vadd.f32 %v774, %v775
    %v777 = vrot.slane %v776, 1
    %v778 = vadd.f32 %v776, %v777
    %s779 = vtos %v778
    %s780 = smul.f32 %s779, 0.00024414063
    %v781 = vand.u32 2147483647, %v753
    %v782 = vadd.f32 %v781, 1e-10
    %v783 = vlog2.pop %v782
    %v784 = vmul.f32 %v783, 0.6931472
    %v785 = vmul.f32 %v781, %v784
    %786 = vadd.xlane.f32.xlu0 %v785
    %v787 = vpop.xlane.xlu0 %786
    %v788 = vrot.slane %v787, 4
    %v789 = vadd.f32 %v787, %v788
    %v790 = vrot.slane %v789, 2
    %v791 = vadd.f32 %v789, %v790
    %v792 = vrot.slane %v791, 1
    %v793 = vadd.f32 %v791, %v792
    %s794 = vtos %v793
    %s795 = ssub.f32 0.0, %s794
    %v796 = vmul.f32 %v93, %v753
    %797 = vadd.xlane.f32.xlu0 %v796
    %v798 = vpop.xlane.xlu0 %797
    %v799 = vmul.f32 %v93, %v93
    %800 = vadd.xlane.f32.xlu0 %v799
    %v801 = vpop.xlane.xlu0 %800
    %v802 = vrsqrt.pop %v801
    %v803 = vmul.f32 %v801, %v802
    %vm804 = vcmp.eq.f32.partialorder %v801, inf
    %v805 = vsel %vm804, %v801, %v803
    %vm806 = vcmp.eq.f32.partialorder %v801, 0.0
    %v807 = vand.u32 %v801, 2147483648
    %v808 = vsel %vm806, %v807, %v805
    %v809 = vmul.f32 %v753, %v753
    %810 = vadd.xlane.f32.xlu0 %v809
    %v811 = vpop.xlane.xlu0 %810
    %v812 = vrsqrt.pop %v811
    %v813 = vmul.f32 %v811, %v812
    %vm814 = vcmp.eq.f32.partialorder %v811, inf
    %v815 = vsel %vm814, %v811, %v813
    %vm816 = vcmp.eq.f32.partialorder %v811, 0.0
    %v817 = vand.u32 %v811, 2147483648
    %v818 = vsel %vm816, %v817, %v815
    %v819 = vmul.f32 %v808, %v818
    %v820 = vmax.f32 %v819, 1e-08
    %v821 = vrcp.pop %v820
    %v822 = vmul.f32 %v798, %v821
    %v823 = vsel %vm759, %v822, 0.0
    %824 = vadd.xlane.f32.xlu0 %v823
    %v825 = vpop.xlane.xlu0 %824
    %v826 = vrot.slane %v825, 4
    %v827 = vadd.f32 %v825, %v826
    %v828 = vrot.slane %v827, 2
    %v829 = vadd.f32 %v827, %v828
    %v830 = vrot.slane %v829, 1
    %v831 = vadd.f32 %v829, %v830
    %s832 = vtos %v831
    %s833 = smul.f32 %s832, 0.125
    %v834 = vlaneseq
    %v835 = vand.u32 %v834, 127
    %vm836 = vcmp.eq.s32.totalorder %v835, 0
    %v837 = vstv %s795
    %v838 = vsel %vm836, %v837, 0.0
    %vm839 = vcmp.eq.s32.totalorder %v835, 1
    %v840 = vstv %s770
    %v841 = vsel %vm839, %v840, 0.0
    %v842 = vadd.f32 %v838, %v841
    %vm843 = vcmp.eq.s32.totalorder %v835, 2
    %v844 = vstv %s833
    %v845 = vsel %vm843, %v844, 0.0
    %v846 = vadd.f32 %v842, %v845
    %vm847 = vcmp.eq.s32.totalorder %v835, 3
    %v848 = vstv %s780
    %v849 = vsel %vm847, %v848, 0.0
    %v850 = vadd.f32 %v846, %v849
    %851 = vst [vmem:[%s7] sm:$0x1] %v850
    // Predicated region
    $region46: #{quantum_security_forward.1} parent=1 // pred_check
      _
    $region47: #{quantum_security_forward.1} parent=1 // pred_check_branch
      %853 = sbr.rel (0) target = $region49
    $region48: #{quantum_security_forward.1} parent=1 // pred_region
      %s855 = ssub.s32 128, 128
      %856 = vsyncadd [#allocation4], %s855
      %s858 = sshll.u32 [#allocation11], 4
      %s859 = int_to_ptr.vmem [resolvable:$true] %s858
      %861 = dma.vmem_to_hbm [thread:$0]  %s859, 128, %s6, [#allocation4]
    $region49: #{quantum_security_forward.1} parent=1 // pred_fallthru
      _
    // Predicated region
    $region50: #{quantum_security_forward.1} parent=1 // pred_check
      _
    $region51: #{quantum_security_forward.1} parent=1 // pred_check_branch
      %863 = sbr.rel (0) target = $region53
    $region52: #{quantum_security_forward.1} parent=1 // pred_region
      _
    $region53: #{quantum_security_forward.1} parent=1 // pred_fallthru
      _
    // Predicated region
    $region54: #{quantum_security_forward.1} parent=1 // pred_check
      _
    $region55: #{quantum_security_forward.1} parent=1 // pred_check_branch
      %865 = sbr.rel (0) target = $region57
    $region56: #{quantum_security_forward.1} parent=1 // pred_region
      %866 = dma.done [#allocation4], 128
    $region57: #{quantum_security_forward.1} parent=1 // pred_fallthru
      _
    // Predicated region
    $region58: #{quantum_security_forward.1} parent=1 // pred_check
      _
    $region59: #{quantum_security_forward.1} parent=1 // pred_check_branch
      %868 = sbr.rel (0) target = $region61
    $region60: #{quantum_security_forward.1} parent=1 // pred_region
      _
    $region61: #{quantum_security_forward.1} parent=1 // pred_fallthru
      _
    %869 = vsyncpa [#allocation3], 1
    %870 = vsyncpa [#allocation6], 1
    %871 = vsyncpa [#allocation9], 1
    %872 = vsyncpa [#allocation4], 1

</llo_original>
